<compile_context>
chip_gen: v7x
topology: tpu7x:2x2x1
jax: 0.10.0
libtpu: 0.0.40
codegen_flags: <defaults>
</compile_context>

<pallas_src>
import functools

import jax
import jax.numpy as jnp
from jax.experimental import pallas as pl
from jax.experimental.pallas import tpu as pltpu


def _round_up(x, m):
    return ((x + m - 1) // m) * m


def _discriminator_kernel(x_ref, w1_ref, b1_ref, w2_ref, b2_ref, w3_ref, b3_ref,
                          o_ref):
    # ---- Linear(input_dim, 256) + LeakyReLU(0.2) ----
    # x arrives f32 (single HBM pass); cast to bf16 on the VPU right before the
    # MXU, accumulate in f32.
    x_bf = x_ref[...].astype(jnp.bfloat16)
    h1 = jnp.dot(x_bf, w1_ref[...],
                 preferred_element_type=jnp.float32) + b1_ref[...]
    h1 = jnp.maximum(h1, 0.2 * h1)

    # ---- Dropout(0.3): identity in eval mode ----

    # ---- Linear(256, 128) + LeakyReLU(0.2) ----
    h2 = jnp.dot(h1.astype(jnp.bfloat16), w2_ref[...],
                 preferred_element_type=jnp.float32) + b2_ref[...]
    h2 = jnp.maximum(h2, 0.2 * h2)

    # ---- Dropout(0.3): identity in eval mode ----

    # ---- Linear(128, 1): elementwise mul + lane reduction (keeps the 1-lane
    #      result off the MXU) ----
    out = jnp.sum(h2 * w3_ref[...], axis=-1, keepdims=True) + b3_ref[...]
    o_ref[...] = out.astype(o_ref.dtype)


def _vmem_footprint_bytes(tm_eff, D, H1, H2):
    x_bytes = 2 * tm_eff * D * 4                      # double-buffered f32 x tile
    inter = tm_eff * (H1 + H2) * 4                    # h1 + h2 f32 intermediates
    weights = 2 * (D * H1 * 2 + H1 * H2 * 2           # w1, w2 (bf16)
                   + (H1 + H2 + H2 + 1) * 4)          # b1, b2, w3_row, b3 (f32)
    out_bytes = 2 * tm_eff * 1 * 4                    # double-buffered output
    return x_bytes + inter + weights + out_bytes


@functools.partial(jax.jit, static_argnames=("tm",))
def discriminator_forward(x, params, *, tm=8192):
    """x: (B, input_dim) float32 -> (B, 1) float32."""
    w1, b1, w2, b2, w3, b3 = params
    B, D = x.shape
    H1, H2 = w1.shape[1], w2.shape[1]
    O = 1

    # Weights are tiny (one-time cast); x stays f32 and is cast inside the kernel.
    w1_bf = w1.astype(jnp.bfloat16)
    w2_bf = w2.astype(jnp.bfloat16)
    w3_row = jnp.reshape(w3, (1, H2)).astype(jnp.float32)   # used on the VPU
    b3_sc = jnp.reshape(b3, (1, 1)).astype(jnp.float32)

    # --- batch tile size ---
    # * multiple of 8 (f32 sublane packing)
    # * <= round_up(ceil(B/2), 8) so the grid has >=2 steps whenever B allows it
    #   (megacore sharding on v7x, small batch padding otherwise)
    # * clamped so the VMEM footprint stays under a v7x-safe budget (~40 MiB)
    half_b = _round_up((B + 1) // 2, 8)
    tm_eff = max(8, min(tm, half_b))
    vmem_budget = 40 * 1024 * 1024
    per_row = 2 * D * 4 + (H1 + H2) * 4 + 2 * O * 4
    tm_cap = max(8, (vmem_budget // 2 // per_row) // 8 * 8)
    tm_eff = min(tm_eff, tm_cap)

    b_pad = _round_up(B, tm_eff)
    if b_pad != B:
        x = jnp.pad(x, ((0, b_pad - B), (0, 0)))

    grid = (b_pad // tm_eff,)

    # Resident (constant-index) blocks for weights/biases; batch-tiled x / out.
    const2d = lambda i: (0, 0)
    in_specs = [
        pl.BlockSpec((tm_eff, D), lambda i: (i, 0)),   # x tile (f32)
        pl.BlockSpec((D, H1), const2d),                # w1 (bf16)
        pl.BlockSpec((1, H1), const2d),                # b1
        pl.BlockSpec((H1, H2), const2d),               # w2 (bf16)
        pl.BlockSpec((1, H2), const2d),                # b2
        pl.BlockSpec((1, H2), const2d),                # w3 as row vector
        pl.BlockSpec((1, 1), const2d),                 # b3
    ]
    out_specs = pl.BlockSpec((tm_eff, O), lambda i: (i, 0))

    footprint = _vmem_footprint_bytes(tm_eff, D, H1, H2)
    vmem_limit = int(min(max(2 * footprint, 16 * 1024 * 1024), 48 * 1024 * 1024))

    flops = 2 * b_pad * (D * H1 + H1 * H2 + H2 * O)
    bytes_accessed = (
        b_pad * D * 4                      # x (f32)
        + D * H1 * 2 + H1 * H2 * 2         # w1, w2 (bf16)
        + (H1 + H2 + H2 + 1) * 4           # b1, b2, w3_row, b3 (f32)
        + b_pad * O * 4                    # output (f32)
    )

    out = pl.pallas_call(
        _discriminator_kernel,
        out_shape=jax.ShapeDtypeStruct((b_pad, O), jnp.float32),
        grid=grid,
        in_specs=in_specs,
        out_specs=out_specs,
        compiler_params=pltpu.CompilerParams(
            dimension_semantics=("parallel",),
            vmem_limit_bytes=vmem_limit,
        ),
        cost_estimate=pl.CostEstimate(
            flops=flops, transcendentals=0, bytes_accessed=bytes_accessed),
    )(x, w1_bf, b1, w2_bf, b2, w3_row, b3_sc)

    return out[:B]


def init_params(key, input_dim):
    """Deterministic PyTorch-Linear-style init: U(-1/sqrt(fan_in), 1/sqrt(fan_in))."""
    dims = [(input_dim, 256), (256, 128), (128, 1)]
    params = []
    for (fan_in, fan_out) in dims:
        key, kw, kb = jax.random.split(key, 3)
        bound = 1.0 / jnp.sqrt(fan_in)
        w = jax.random.uniform(kw, (fan_in, fan_out), jnp.float32, -bound, bound)
        b = jax.random.uniform(kb, (1, fan_out), jnp.float32, -bound, bound)
        params.extend([w, b])
    return tuple(params)


def reference_forward(x, params):
    """Plain-JAX reference (same bf16-input / f32-accum numerics as the kernel)."""
    w1, b1, w2, b2, w3, b3 = params
    h = jnp.dot(x.astype(jnp.bfloat16), w1.astype(jnp.bfloat16),
                preferred_element_type=jnp.float32) + b1
    h = jnp.maximum(h, 0.2 * h)
    h = jnp.dot(h.astype(jnp.bfloat16), w2.astype(jnp.bfloat16),
                preferred_element_type=jnp.float32) + b2
    h = jnp.maximum(h, 0.2 * h)
    return jnp.dot(h, w3) + b3


if __name__ == "__main__":
    key = jax.random.PRNGKey(0)
    key, kx = jax.random.split(key)

    batch, input_dim = 8, 32
    x = jax.random.normal(kx, (batch, input_dim), jnp.float32)
    params = init_params(key, input_dim)

    out = discriminator_forward(x, params)
    out = jax.block_until_ready(out)

    ref = reference_forward(x, params)
    assert out.shape == (batch, 1), out.shape
    assert jnp.allclose(out, ref, atol=2e-2, rtol=2e-2), "mismatch vs reference"

    print("KERNEL_OK")
</pallas_src>

<mosaic_0001>
module attributes {stable_mosaic.version = 11 : i64} {
  func.func @_discriminator_kernel(%arg0: i32, %arg1: memref<8x32xf32, #tpu.memory_space<vmem>>, %arg2: memref<32x256xbf16, #tpu.memory_space<vmem>>, %arg3: memref<1x256xf32, #tpu.memory_space<vmem>>, %arg4: memref<256x128xbf16, #tpu.memory_space<vmem>>, %arg5: memref<1x128xf32, #tpu.memory_space<vmem>>, %arg6: memref<1x128xf32, #tpu.memory_space<vmem>>, %arg7: memref<1x1xf32, #tpu.memory_space<vmem>>, %arg8: memref<8x1xf32, #tpu.memory_space<vmem>>) attributes {dimension_semantics = [#tpu.dimension_semantics<parallel>], iteration_bounds = array<i64: 1>, scalar_prefetch = 0 : i64, scratch_operands = 0 : i64, tpu.core_type = #tpu.core_type<tc>, window_params = [{transform_indices = @transform_0, window_bounds = array<i64: 8, 32>}, {pipeline_mode = #tpu.pipeline_mode<synchronous>, transform_indices = @transform_1, window_bounds = array<i64: 32, 256>}, {pipeline_mode = #tpu.pipeline_mode<synchronous>, transform_indices = @transform_2, window_bounds = array<i64: 1, 256>}, {pipeline_mode = #tpu.pipeline_mode<synchronous>, transform_indices = @transform_3, window_bounds = array<i64: 256, 128>}, {pipeline_mode = #tpu.pipeline_mode<synchronous>, transform_indices = @transform_4, window_bounds = array<i64: 1, 128>}, {pipeline_mode = #tpu.pipeline_mode<synchronous>, transform_indices = @transform_5, window_bounds = array<i64: 1, 128>}, {pipeline_mode = #tpu.pipeline_mode<synchronous>, transform_indices = @transform_6, window_bounds = array<i64: 1, 1>}, {transform_indices = @transform_7, window_bounds = array<i64: 8, 1>}]} {
    %c0 = arith.constant 0 : index
    %c0_0 = arith.constant 0 : index
    %0 = vector.load %arg1[%c0, %c0_0] : memref<8x32xf32, #tpu.memory_space<vmem>>, vector<8x32xf32>
    %1 = arith.truncf %0 : vector<8x32xf32> to vector<8x32xbf16>
    %c0_1 = arith.constant 0 : index
    %c0_2 = arith.constant 0 : index
    %2 = vector.load %arg2[%c0_1, %c0_2] : memref<32x256xbf16, #tpu.memory_space<vmem>>, vector<32x256xbf16>
    %cst = arith.constant dense<0.000000e+00> : vector<8x256xf32>
    %3 = tpu.matmul %1, %2, %cst {dimension_numbers = #tpu.dot_dimension_numbers<[1], [0], [0], [1], [0, 0, 1, 1], [], []>} : vector<8x32xbf16>, vector<32x256xbf16>, vector<8x256xf32> -> vector<8x256xf32>
    %c0_3 = arith.constant 0 : index
    %c0_4 = arith.constant 0 : index
    %4 = vector.load %arg3[%c0_3, %c0_4] : memref<1x256xf32, #tpu.memory_space<vmem>>, vector<1x256xf32>
    %5 = vector.broadcast %4 : vector<1x256xf32> to vector<8x256xf32>
    %6 = arith.addf %3, %5 : vector<8x256xf32>
    %cst_5 = arith.constant 2.000000e-01 : f32
    %7 = vector.broadcast %cst_5 : f32 to vector<8x256xf32>
    %8 = arith.mulf %7, %6 : vector<8x256xf32>
    %9 = arith.maximumf %6, %8 : vector<8x256xf32>
    %10 = arith.truncf %9 : vector<8x256xf32> to vector<8x256xbf16>
    %c0_6 = arith.constant 0 : index
    %c0_7 = arith.constant 0 : index
    %11 = vector.load %arg4[%c0_6, %c0_7] : memref<256x128xbf16, #tpu.memory_space<vmem>>, vector<256x128xbf16>
    %cst_8 = arith.constant dense<0.000000e+00> : vector<8x128xf32>
    %12 = tpu.matmul %10, %11, %cst_8 {dimension_numbers = #tpu.dot_dimension_numbers<[1], [0], [0], [1], [0, 0, 1, 1], [], []>} : vector<8x256xbf16>, vector<256x128xbf16>, vector<8x128xf32> -> vector<8x128xf32>
    %c0_9 = arith.constant 0 : index
    %c0_10 = arith.constant 0 : index
    %13 = vector.load %arg5[%c0_9, %c0_10] : memref<1x128xf32, #tpu.memory_space<vmem>>, vector<1x128xf32>
    %14 = vector.broadcast %13 : vector<1x128xf32> to vector<8x128xf32>
    %15 = arith.addf %12, %14 : vector<8x128xf32>
    %cst_11 = arith.constant 2.000000e-01 : f32
    %16 = vector.broadcast %cst_11 : f32 to vector<8x128xf32>
    %17 = arith.mulf %16, %15 : vector<8x128xf32>
    %18 = arith.maximumf %15, %17 : vector<8x128xf32>
    %c0_12 = arith.constant 0 : index
    %c0_13 = arith.constant 0 : index
    %19 = vector.load %arg6[%c0_12, %c0_13] : memref<1x128xf32, #tpu.memory_space<vmem>>, vector<1x128xf32>
    %20 = vector.broadcast %19 : vector<1x128xf32> to vector<8x128xf32>
    %21 = arith.mulf %18, %20 : vector<8x128xf32>
    %cst_14 = arith.constant dense<0.000000e+00> : vector<8xf32>
    %22 = vector.multi_reduction <add>, %21, %cst_14 [1] : vector<8x128xf32> to vector<8xf32>
    %23 = vector.shape_cast %22 : vector<8xf32> to vector<8x1xf32>
    %c0_15 = arith.constant 0 : index
    %c0_16 = arith.constant 0 : index
    %24 = vector.load %arg7[%c0_15, %c0_16] : memref<1x1xf32, #tpu.memory_space<vmem>>, vector<1x1xf32>
    %25 = vector.broadcast %24 : vector<1x1xf32> to vector<8x1xf32>
    %26 = arith.addf %23, %25 : vector<8x1xf32>
    %c0_17 = arith.constant 0 : index
    %c0_18 = arith.constant 0 : index
    %27 = vector.load %arg8[%c0_17, %c0_18] : memref<8x1xf32, #tpu.memory_space<vmem>>, vector<8x1xf32>
    tpu.vector_store %arg8[%c0_17, %c0_18], %26 {strides = array<i32>} : memref<8x1xf32, #tpu.memory_space<vmem>>, vector<8x1xf32>,
    return
  }
  func.func @transform_0(%arg0: i32) -> (i32, i32) {
    %c0_i32 = arith.constant 0 : i32
    %c0_i32_0 = arith.constant 0 : i32
    return %arg0, %c0_i32 : i32, i32
  }
  func.func @transform_1(%arg0: i32) -> (i32, i32) {
    %c0_i32 = arith.constant 0 : i32
    %c0_i32_0 = arith.constant 0 : i32
    %c0_i32_1 = arith.constant 0 : i32
    return %c0_i32, %c0_i32_0 : i32, i32
  }
  func.func @transform_2(%arg0: i32) -> (i32, i32) {
    %c0_i32 = arith.constant 0 : i32
    %c0_i32_0 = arith.constant 0 : i32
    %c0_i32_1 = arith.constant 0 : i32
    return %c0_i32, %c0_i32_0 : i32, i32
  }
  func.func @transform_3(%arg0: i32) -> (i32, i32) {
    %c0_i32 = arith.constant 0 : i32
    %c0_i32_0 = arith.constant 0 : i32
    %c0_i32_1 = arith.constant 0 : i32
    return %c0_i32, %c0_i32_0 : i32, i32
  }
  func.func @transform_4(%arg0: i32) -> (i32, i32) {
    %c0_i32 = arith.constant 0 : i32
    %c0_i32_0 = arith.constant 0 : i32
    %c0_i32_1 = arith.constant 0 : i32
    return %c0_i32, %c0_i32_0 : i32, i32
  }
  func.func @transform_5(%arg0: i32) -> (i32, i32) {
    %c0_i32 = arith.constant 0 : i32
    %c0_i32_0 = arith.constant 0 : i32
    %c0_i32_1 = arith.constant 0 : i32
    return %c0_i32, %c0_i32_0 : i32, i32
  }
  func.func @transform_6(%arg0: i32) -> (i32, i32) {
    %c0_i32 = arith.constant 0 : i32
    %c0_i32_0 = arith.constant 0 : i32
    %c0_i32_1 = arith.constant 0 : i32
    return %c0_i32, %c0_i32_0 : i32, i32
  }
  func.func @transform_7(%arg0: i32) -> (i32, i32) {
    %c0_i32 = arith.constant 0 : i32
    %c0_i32_0 = arith.constant 0 : i32
    return %arg0, %c0_i32 : i32, i32
  }
}

</mosaic_0001>

<llo_original>
// kernel: discriminator_forward.1
$region0: #{discriminator_forward.1}
  #allocation0 [shape = 'u32[]', space=smem, size = 0x4, offset = 0x4, fixed_abs, tag = 'smem constant byte address 0x4 - core index']
  #allocation1 [shape = 'u32[144,128]{1,0:T(1,128)}', space=vmem, size = 0x12000, scoped, tag = 'internal scratch']
  #allocation2 [shape = 'f32[1,1]{1,0:T(1,128)S(1)}', space=vmem, size = 0x200, scoped, tag = 'scoped memory for discriminator_forward.1']
  %s0 = inlined_call_operand.vmem [shape: f32[8,32], index: 0, kind: input, shape index: {}]
  %s1 = inlined_call_operand.vmem [shape: bf16[32,256], index: 1, kind: input, shape index: {}]
  %s2 = inlined_call_operand.vmem [shape: f32[1,256], index: 2, kind: input, shape index: {}]
  %s3 = inlined_call_operand.vmem [shape: bf16[256,128], index: 3, kind: input, shape index: {}]
  %s4 = inlined_call_operand.vmem [shape: f32[1,128], index: 4, kind: input, shape index: {}]
  %s5 = inlined_call_operand.vmem [shape: f32[1,128], index: 5, kind: input, shape index: {}]
  %s6 = inlined_call_operand.<no memory space> [shape: f32[1,1], index: 6, kind: input, shape index: {}]
  %s7 = inlined_call_operand.vmem [shape: f32[8,1], index: 7, kind: output, shape index: {}]
  %s8 = sld [smem:[#allocation0]]
  $region38: #{discriminator_forward.1} parent=0
    _
  %s10 = ssub.s32 1, %s8
  %s11 = scalar_select 0, %s10, %s8
  %v12 = vstv %s6
  %13 = vst [vmem:[#allocation2] sm:$0x1] %v12
  // Predicated region
  $region2: #{discriminator_forward.1} parent=0 // pred_check
    _
  $region3: #{discriminator_forward.1} parent=0 // pred_check_branch
    %15 = sbr.rel (0) target = $region5
  $region4: #{discriminator_forward.1} parent=0 // pred_region
    _
  $region5: #{discriminator_forward.1} parent=0 // pred_fallthru
    _
  // Predicated region
  $region6: #{discriminator_forward.1} parent=0 // pred_check
    _
  $region7: #{discriminator_forward.1} parent=0 // pred_check_branch
    %17 = sbr.rel (0) target = $region9
  $region8: #{discriminator_forward.1} parent=0 // pred_region
    _
  $region9: #{discriminator_forward.1} parent=0 // pred_fallthru
    _
  // Predicated region
  $region10: #{discriminator_forward.1} parent=0 // pred_check
    _
  $region11: #{discriminator_forward.1} parent=0 // pred_check_branch
    %19 = sbr.rel (0) target = $region13
  $region12: #{discriminator_forward.1} parent=0 // pred_region
    _
  $region13: #{discriminator_forward.1} parent=0 // pred_fallthru
    _
  // Predicated region
  $region14: #{discriminator_forward.1} parent=0 // pred_check
    _
  $region15: #{discriminator_forward.1} parent=0 // pred_check_branch
    %21 = sbr.rel (0) target = $region17
  $region16: #{discriminator_forward.1} parent=0 // pred_region
    _
  $region17: #{discriminator_forward.1} parent=0 // pred_fallthru
    _
  // Predicated region
  $region18: #{discriminator_forward.1} parent=0 // pred_check
    _
  $region19: #{discriminator_forward.1} parent=0 // pred_check_branch
    %23 = sbr.rel (0) target = $region21
  $region20: #{discriminator_forward.1} parent=0 // pred_region
    _
  $region21: #{discriminator_forward.1} parent=0 // pred_fallthru
    _
  // Predicated region
  $region22: #{discriminator_forward.1} parent=0 // pred_check
    _
  $region23: #{discriminator_forward.1} parent=0 // pred_check_branch
    %25 = sbr.rel (0) target = $region25
  $region24: #{discriminator_forward.1} parent=0 // pred_region
    _
  $region25: #{discriminator_forward.1} parent=0 // pred_fallthru
    _
  // Predicated region
  $region26: #{discriminator_forward.1} parent=0 // pred_check
    _
  $region27: #{discriminator_forward.1} parent=0 // pred_check_branch
    %27 = sbr.rel (0) target = $region29
  $region28: #{discriminator_forward.1} parent=0 // pred_region
    _
  $region29: #{discriminator_forward.1} parent=0 // pred_fallthru
    _
  %v29 = vld [vmem:[%s0] sm:$0xff]
  %v30 = vpack.c.bf16 %v29, %v29
  %v31 = vld [vmem:[%s1] sm:$0xff]
  %v32 = vld [vmem:[%s1 + $0x8] sm:$0xff]
  %v33 = vld [vmem:[%s1 + $0x10] sm:$0xff]
  %v34 = vld [vmem:[%s1 + $0x18] sm:$0xff]
  %v35 = vld [vmem:[%s2] sm:$0x3]
  %v37 = vlaneseq
  %v38 = vshrl.u32 %v37, 7
  %v39 = vsub.s32 0, %v38
  %v40 = vrot.slane %v35, %v39
  %v41 = vlaneseq
  %v42 = vshrl.u32 %v41, 7
  %v43 = vsub.s32 1, %v42
  %v44 = vrot.slane %v35, %v43
  %v51 = vunpack.c.l.b16 %v31
  %v52 = vunpack.c.h.b16 %v31
  %v53 = vunpack.c.l.b16 %v32
  %v54 = vunpack.c.h.b16 %v32
  %v55 = vunpack.c.l.b16 %v33
  %v56 = vunpack.c.h.b16 %v33
  %v57 = vunpack.c.l.b16 %v34
  %v58 = vunpack.c.h.b16 %v34
  %v59 = vpack.c.b16 %v53, %v51
  %v60 = vpack.c.b16 %v54, %v52
  %v61 = vpack.c.b16 %v57, %v55
  %v62 = vpack.c.b16 %v58, %v56
  %vm67 = vcmask 261120
  %v69 = vsel %vm67, %v30, 0
  %71 = vmatprep.subr.bf16.mxu0 %v60
  %72 = vmatpush1.bf16.msra.mxu0 %v59
  %73 = vmatprep.subr.bf16.mxu0 %v62
  %74 = vmatpush1.bf16.msra.mxu0 %v61
  %75 = vmatprep.subr.bf16.mxu0 0
  %76 = vmatpush1.bf16.msra.mxu0 0
  %77 = vmatprep.subr.bf16.mxu0 0
  %78 = vmatpush1.bf16.msra.mxu0 0
  %79 = vmatprep.subr.bf16.mxu0 0
  %80 = vmatpush1.bf16.msra.mxu0 0
  %81 = vmatprep.subr.bf16.mxu0 0
  %82 = vmatpush1.bf16.msra.mxu0 0
  %83 = vmatprep.subr.bf16.mxu0 0
  %84 = vmatpush1.bf16.msra.mxu0 0
  %85 = vmatprep.subr.bf16.mxu0 0
  %86 = vmatpush1.bf16.msra.mxu0 0
  %87 = vmatprep.subr.bf16.mxu0 0
  %88 = vmatpush1.bf16.msra.mxu0 0
  %89 = vmatprep.subr.bf16.mxu0 0
  %90 = vmatpush1.bf16.msra.mxu0 0
  %91 = vmatprep.subr.bf16.mxu0 0
  %92 = vmatpush1.bf16.msra.mxu0 0
  %93 = vmatprep.subr.bf16.mxu0 0
  %94 = vmatpush1.bf16.msra.mxu0 0
  %95 = vmatprep.subr.bf16.mxu0 0
  %96 = vmatpush1.bf16.msra.mxu0 0
  %97 = vmatprep.subr.bf16.mxu0 0
  %98 = vmatpush1.bf16.msra.mxu0 0
  %99 = vmatprep.subr.bf16.mxu0 0
  %100 = vmatpush1.bf16.msra.mxu0 0
  %101 = vmatprep.subr.bf16.mxu0 0
  %102 = vmatpush1.bf16.msra.mxu0 0
  %103 = vmatprep.mubr.bf16.mxu0 0
  %104 = vmatmul.mubr.bf16.gmra.mrb[0].mxu0 %v69
  %v105 = vpop.f32.mrb[0].mxu0
  %v106 = vadd.f32 %v40, %v105
  %v107 = vpop.f32.mrb[0].mxu0
  %v108 = vadd.f32 %v44, %v107
  %v109 = vpop.f32.mrb[0].mxu0
  %v110 = vpop.f32.mrb[0].mxu0
  %111 = vdwg.mxu0
  %v112 = vmul.f32 %v106, 0.2
  %v113 = vmul.f32 %v108, 0.2
  %v114 = vmax.f32 %v106, %v112
  %v115 = vmax.f32 %v108, %v113
  %v116 = vpack.c.bf16 %v114, %v114
  %v117 = vpack.c.bf16 %v115, %v115
  %v118 = vld [vmem:[%s3] sm:$0xf]
  %v119 = vld [vmem:[%s3 + $0x4] sm:$0xf]
  %v120 = vld [vmem:[%s3 + $0x8] sm:$0xf]
  %v121 = vld [vmem:[%s3 + $0xc] sm:$0xf]
  %v122 = vld [vmem:[%s3 + $0x10] sm:$0xf]
  %v123 = vld [vmem:[%s3 + $0x14] sm:$0xf]
  %v124 = vld [vmem:[%s3 + $0x18] sm:$0xf]
  %v125 = vld [vmem:[%s3 + $0x1c] sm:$0xf]
  %v126 = vld [vmem:[%s3 + $0x20] sm:$0xf]
  %v127 = vld [vmem:[%s3 + $0x24] sm:$0xf]
  %v128 = vld [vmem:[%s3 + $0x28] sm:$0xf]
  %v129 = vld [vmem:[%s3 + $0x2c] sm:$0xf]
  %v130 = vld [vmem:[%s3 + $0x30] sm:$0xf]
  %v131 = vld [vmem:[%s3 + $0x34] sm:$0xf]
  %v132 = vld [vmem:[%s3 + $0x38] sm:$0xf]
  %v133 = vld [vmem:[%s3 + $0x3c] sm:$0xf]
  %v134 = vld [vmem:[%s3 + $0x40] sm:$0xf]
  %v135 = vld [vmem:[%s3 + $0x44] sm:$0xf]
  %v136 = vld [vmem:[%s3 + $0x48] sm:$0xf]
  %v137 = vld [vmem:[%s3 + $0x4c] sm:$0xf]
  %v138 = vld [vmem:[%s3 + $0x50] sm:$0xf]
  %v139 = vld [vmem:[%s3 + $0x54] sm:$0xf]
  %v140 = vld [vmem:[%s3 + $0x58] sm:$0xf]
  %v141 = vld [vmem:[%s3 + $0x5c] sm:$0xf]
  %v142 = vld [vmem:[%s3 + $0x60] sm:$0xf]
  %v143 = vld [vmem:[%s3 + $0x64] sm:$0xf]
  %v144 = vld [vmem:[%s3 + $0x68] sm:$0xf]
  %v145 = vld [vmem:[%s3 + $0x6c] sm:$0xf]
  %v146 = vld [vmem:[%s3 + $0x70] sm:$0xf]
  %v147 = vld [vmem:[%s3 + $0x74] sm:$0xf]
  %v148 = vld [vmem:[%s3 + $0x78] sm:$0xf]
  %v149 = vld [vmem:[%s3 + $0x7c] sm:$0xf]
  %v150 = vld [vmem:[%s4] sm:$0x1]
  %v152 = vlaneseq
  %v153 = vshrl.u32 %v152, 7
  %v154 = vsub.s32 0, %v153
  %v155 = vrot.slane %v150, %v154
  %v189 = vunpack.c.l.b16 %v118
  %v190 = vunpack.c.l.b16 %v119
  %v191 = vunpack.c.l.b16 %v120
  %v192 = vunpack.c.l.b16 %v121
  %v193 = vunpack.c.l.b16 %v122
  %v194 = vunpack.c.l.b16 %v123
  %v195 = vunpack.c.l.b16 %v124
  %v196 = vunpack.c.l.b16 %v125
  %v197 = vunpack.c.l.b16 %v126
  %v198 = vunpack.c.l.b16 %v127
  %v199 = vunpack.c.l.b16 %v128
  %v200 = vunpack.c.l.b16 %v129
  %v201 = vunpack.c.l.b16 %v130
  %v202 = vunpack.c.l.b16 %v131
  %v203 = vunpack.c.l.b16 %v132
  %v204 = vunpack.c.l.b16 %v133
  %v205 = vunpack.c.l.b16 %v134
  %v206 = vunpack.c.l.b16 %v135
  %v207 = vunpack.c.l.b16 %v136
  %v208 = vunpack.c.l.b16 %v137
  %v209 = vunpack.c.l.b16 %v138
  %v210 = vunpack.c.l.b16 %v139
  %v211 = vunpack.c.l.b16 %v140
  %v212 = vunpack.c.l.b16 %v141
  %v213 = vunpack.c.l.b16 %v142
  %v214 = vunpack.c.l.b16 %v143
  %v215 = vunpack.c.l.b16 %v144
  %v216 = vunpack.c.l.b16 %v145
  %v217 = vunpack.c.l.b16 %v146
  %v218 = vunpack.c.l.b16 %v147
  %v219 = vunpack.c.l.b16 %v148
  %v220 = vunpack.c.l.b16 %v149
  %v221 = vpack.c.b16 %v190, %v189
  %v222 = vpack.c.b16 %v192, %v191
  %v223 = vpack.c.b16 %v194, %v193
  %v224 = vpack.c.b16 %v196, %v195
  %v225 = vpack.c.b16 %v198, %v197
  %v226 = vpack.c.b16 %v200, %v199
  %v227 = vpack.c.b16 %v202, %v201
  %v228 = vpack.c.b16 %v204, %v203
  %v229 = vpack.c.b16 %v206, %v205
  %v230 = vpack.c.b16 %v208, %v207
  %v231 = vpack.c.b16 %v210, %v209
  %v232 = vpack.c.b16 %v212, %v211
  %v233 = vpack.c.b16 %v214, %v213
  %v234 = vpack.c.b16 %v216, %v215
  %v235 = vpack.c.b16 %v218, %v217
  %v236 = vpack.c.b16 %v220, %v219
  %253 = vmatprep.subr.bf16.mxu0 0
  %254 = vmatpush1.bf16.msra.mxu0 %v221
  %255 = vmatprep.subr.bf16.mxu0 0
  %256 = vmatpush1.bf16.msra.mxu0 %v222
  %257 = vmatprep.subr.bf16.mxu0 0
  %258 = vmatpush1.bf16.msra.mxu0 %v223
  %259 = vmatprep.subr.bf16.mxu0 0
  %260 = vmatpush1.bf16.msra.mxu0 %v224
  %261 = vmatprep.subr.bf16.mxu0 0
  %262 = vmatpush1.bf16.msra.mxu0 %v225
  %263 = vmatprep.subr.bf16.mxu0 0
  %264 = vmatpush1.bf16.msra.mxu0 %v226
  %265 = vmatprep.subr.bf16.mxu0 0
  %266 = vmatpush1.bf16.msra.mxu0 %v227
  %267 = vmatprep.subr.bf16.mxu0 0
  %268 = vmatpush1.bf16.msra.mxu0 %v228
  %269 = vmatprep.subr.bf16.mxu0 0
  %270 = vmatpush1.bf16.msra.mxu0 %v229
  %271 = vmatprep.subr.bf16.mxu0 0
  %272 = vmatpush1.bf16.msra.mxu0 %v230
  %273 = vmatprep.subr.bf16.mxu0 0
  %274 = vmatpush1.bf16.msra.mxu0 %v231
  %275 = vmatprep.subr.bf16.mxu0 0
  %276 = vmatpush1.bf16.msra.mxu0 %v232
  %277 = vmatprep.subr.bf16.mxu0 0
  %278 = vmatpush1.bf16.msra.mxu0 %v233
  %279 = vmatprep.subr.bf16.mxu0 0
  %280 = vmatpush1.bf16.msra.mxu0 %v234
  %281 = vmatprep.subr.bf16.mxu0 0
  %282 = vmatpush1.bf16.msra.mxu0 %v235
  %283 = vmatprep.subr.bf16.mxu0 0
  %284 = vmatpush1.bf16.msra.mxu0 %v236
  %285 = vmatprep.mubr.bf16.mxu0 %v117
  %286 = vmatmul.mubr.bf16.gmra.mrb[0].mxu0 %v116
  %v287 = vpop.f32.mrb[0].mxu0
  %v288 = vadd.f32 %v155, %v287
  %v289 = vpop.f32.mrb[0].mxu0
  %v290 = vpop.f32.mrb[0].mxu0
  %v291 = vpop.f32.mrb[0].mxu0
  %292 = vdwg.mxu0
  %v293 = vmul.f32 %v288, 0.2
  %v294 = vmax.f32 %v288, %v293
  %v295 = vld [vmem:[%s5] sm:$0x1]
  %v297 = vlaneseq
  %v298 = vshrl.u32 %v297, 7
  %v299 = vsub.s32 0, %v298
  %v300 = vrot.slane %v295, %v299
  %v302 = vmul.f32 %v294, %v300
  %303 = vadd.xlane.f32.xlu0 %v302
  %v304 = vpop.xlane.xlu0 %303
  %v305 = vld [vmem:[#allocation2] sm:$0x1]
  %v307 = vlaneseq
  %v308 = vshrl.u32 %v307, 7
  %v309 = vsub.s32 0, %v308
  %v310 = vrot.slane %v305, %v309
  %v312 = vadd.f32 %v304, %v310
  %vm313 = vcmask 7168
  %314 = vst.msk [vmem:[%s7] sm:$0xff] %vm313, %v312
  // Predicated region
  $region30: #{discriminator_forward.1} parent=0 // pred_check
    _
  $region31: #{discriminator_forward.1} parent=0 // pred_check_branch
    %316 = sbr.rel (0) target = $region33
  $region32: #{discriminator_forward.1} parent=0 // pred_region
    _
  $region33: #{discriminator_forward.1} parent=0 // pred_fallthru
    _
  // Predicated region
  $region34: #{discriminator_forward.1} parent=0 // pred_check
    _
  $region35: #{discriminator_forward.1} parent=0 // pred_check_branch
    %318 = sbr.rel (0) target = $region37
  $region36: #{discriminator_forward.1} parent=0 // pred_region
    _
  $region37: #{discriminator_forward.1} parent=0 // pred_fallthru
    _

</llo_original>
